<compile_context>
chip_gen: v7x
topology: tpu7x:2x2x1
jax: 0.10.0
libtpu: 0.0.40
codegen_flags: <defaults>
</compile_context>

<pallas_src>
import functools

import jax
import jax.numpy as jnp
from jax.experimental import pallas as pl
from jax.experimental.pallas import tpu as pltpu


def _smear_kernel(offs_ref, d_ref, o_ref, *, coeff):
    # offs_ref: (1, G) gaussian centers (same block every grid step)
    # d_ref:    (tile, 1) distances for this row block
    # o_ref:    (tile, G) output block in the PyTorch orientation
    diff = d_ref[...] - offs_ref[...]          # (tile,1)-(1,G) -> (tile,G)
    o_ref[...] = jnp.exp(coeff * diff * diff).astype(o_ref.dtype)


def _round_up(x, m):
    return ((x + m - 1) // m) * m


def gaussian_smearing(dist, start=0.0, stop=5.0, num_gaussians=50,
                      max_tile_rows=8192, out_dtype=jnp.float32):
    """Pallas port of GaussianSmearing.forward. Returns (N, num_gaussians)."""
    if num_gaussians < 2:
        raise ValueError("num_gaussians must be >= 2 (PyTorch module divides "
                         "by offset[1]-offset[0]).")
    start = float(start)
    stop = float(stop)
    step = (stop - start) / (num_gaussians - 1)
    coeff = -0.5 / (step * step)

    d = jnp.asarray(dist, jnp.float32).reshape(-1, 1)   # (N, 1)
    n = d.shape[0]
    if n == 0:
        return jnp.zeros((0, num_gaussians), out_dtype)

    # Gaussian centers, computed once on the host side (matches torch.linspace).
    offsets = jnp.linspace(start, stop, num_gaussians,
                           dtype=jnp.float32).reshape(1, num_gaussians)

    # ---- Row-tile selection ------------------------------------------------
    # Small N:  one exact block (block dims == array dims; no boundary).
    # Medium N: exactly 2 blocks so both v7x TensorCores get work.
    # Large N:  max_tile_rows-row blocks; last block is a masked boundary block.
    max_tile = max(8, (int(max_tile_rows) // 8) * 8)
    if n <= min(1024, max_tile):
        tile = n
    elif n <= 2 * max_tile:
        tile = _round_up(pl.cdiv(n, 2), 8)
    else:
        tile = max_tile
    grid = pl.cdiv(n, tile)

    kernel = functools.partial(_smear_kernel, coeff=coeff)

    out = pl.pallas_call(
        kernel,
        out_shape=jax.ShapeDtypeStruct((n, num_gaussians), out_dtype),
        grid=(grid,),
        in_specs=[
            # Offsets: same (1, G) block every step -> resident, no re-DMA.
            pl.BlockSpec((1, num_gaussians), lambda i: (0, 0)),
            # Distances: one (tile, 1) column block per step.
            pl.BlockSpec((tile, 1), lambda i: (i, 0)),
        ],
        out_specs=pl.BlockSpec((tile, num_gaussians), lambda i: (i, 0)),
        compiler_params=pltpu.CompilerParams(
            dimension_semantics=("parallel",),
            vmem_limit_bytes=48 * 1024 * 1024),
    )(offsets, d)
    return out


def gaussian_smearing_ref(dist, start=0.0, stop=5.0, num_gaussians=50):
    offset = jnp.linspace(start, stop, num_gaussians, dtype=jnp.float32)
    step = (stop - start) / (num_gaussians - 1)
    coeff = -0.5 / (step ** 2)
    d = dist.reshape(-1, 1) - offset.reshape(1, -1)
    return jnp.exp(coeff * d * d)


if __name__ == "__main__":
    key = jax.random.PRNGKey(0)
    k1, k2 = jax.random.split(key)

    # dist ~ pairwise edge distances, values in [0, 5)
    dist = jax.random.uniform(k1, (60,), jnp.float32, 0.0, 5.0)
    out = jax.block_until_ready(gaussian_smearing(dist))
    ref = gaussian_smearing_ref(dist)
    assert out.shape == (60, 50), out.shape
    assert jnp.allclose(out, ref, atol=1e-5, rtol=1e-5), "mismatch vs reference"

    # Exercise the multi-block path (3 grid steps, partial last block).
    dist2 = jax.random.uniform(k2, (300,), jnp.float32, 0.0, 5.0)
    out2 = jax.block_until_ready(gaussian_smearing(dist2, max_tile_rows=128))
    ref2 = gaussian_smearing_ref(dist2)
    assert out2.shape == (300, 50), out2.shape
    assert jnp.allclose(out2, ref2, atol=1e-5, rtol=1e-5), "mismatch (tiled path)"

    print("KERNEL_OK")
</pallas_src>

<mosaic_0001>
module attributes {stable_mosaic.version = 11 : i64} {
  func.func @_smear_kernel(%arg0: i32, %arg1: memref<1x50xf32, #tpu.memory_space<vmem>>, %arg2: memref<60x1xf32, #tpu.memory_space<vmem>>, %arg3: memref<60x50xf32, #tpu.memory_space<vmem>>) attributes {dimension_semantics = [#tpu.dimension_semantics<parallel>], iteration_bounds = array<i64: 1>, scalar_prefetch = 0 : i64, scratch_operands = 0 : i64, tpu.core_type = #tpu.core_type<tc>, window_params = [{pipeline_mode = #tpu.pipeline_mode<synchronous>, transform_indices = @transform_0, window_bounds = array<i64: 1, 50>}, {transform_indices = @transform_1, window_bounds = array<i64: 60, 1>}, {transform_indices = @transform_2, window_bounds = array<i64: 60, 50>}]} {
    %c0 = arith.constant 0 : index
    %c0_0 = arith.constant 0 : index
    %0 = vector.load %arg2[%c0, %c0_0] : memref<60x1xf32, #tpu.memory_space<vmem>>, vector<60x1xf32>
    %c0_1 = arith.constant 0 : index
    %c0_2 = arith.constant 0 : index
    %1 = vector.load %arg1[%c0_1, %c0_2] : memref<1x50xf32, #tpu.memory_space<vmem>>, vector<1x50xf32>
    %2 = vector.broadcast %0 : vector<60x1xf32> to vector<60x50xf32>
    %3 = vector.broadcast %1 : vector<1x50xf32> to vector<60x50xf32>
    %4 = arith.subf %2, %3 : vector<60x50xf32>
    %cst = arith.constant -4.802000e+01 : f32
    %5 = vector.broadcast %cst : f32 to vector<60x50xf32>
    %6 = arith.mulf %5, %4 : vector<60x50xf32>
    %7 = arith.mulf %6, %4 : vector<60x50xf32>
    %8 = math.exp %7 : vector<60x50xf32>
    %c0_3 = arith.constant 0 : index
    %c0_4 = arith.constant 0 : index
    %9 = vector.load %arg3[%c0_3, %c0_4] : memref<60x50xf32, #tpu.memory_space<vmem>>, vector<60x50xf32>
    tpu.vector_store %arg3[%c0_3, %c0_4], %8 {strides = array<i32>} : memref<60x50xf32, #tpu.memory_space<vmem>>, vector<60x50xf32>,
    return
  }
  func.func @transform_0(%arg0: i32) -> (i32, i32) {
    %c0_i32 = arith.constant 0 : i32
    %c0_i32_0 = arith.constant 0 : i32
    %c0_i32_1 = arith.constant 0 : i32
    return %c0_i32, %c0_i32_0 : i32, i32
  }
  func.func @transform_1(%arg0: i32) -> (i32, i32) {
    %c0_i32 = arith.constant 0 : i32
    %c0_i32_0 = arith.constant 0 : i32
    return %arg0, %c0_i32 : i32, i32
  }
  func.func @transform_2(%arg0: i32) -> (i32, i32) {
    %c0_i32 = arith.constant 0 : i32
    %c0_i32_0 = arith.constant 0 : i32
    return %arg0, %c0_i32 : i32, i32
  }
}

</mosaic_0001>

<llo_original>
// kernel: tpu_custom_call.1
$region0: #{tpu_custom_call.1}
  #allocation0 [shape = 'u32[]', space=smem, size = 0x4, offset = 0x4, fixed_abs, tag = 'smem constant byte address 0x4 - core index']
  #allocation1 [shape = 'u32[144,128]{1,0:T(1,128)}', space=vmem, size = 0x12000, scoped, tag = 'internal scratch']
  %s0 = inlined_call_operand.vmem [shape: f32[1,50], index: 0, kind: input, shape index: {}]
  %s1 = inlined_call_operand.vmem [shape: f32[60,1], index: 1, kind: input, shape index: {}]
  %s2 = inlined_call_operand.vmem [shape: f32[60,50], index: 2, kind: output, shape index: {}]
  %s3 = sld [smem:[#allocation0]]
  $region18: #{tpu_custom_call.1} parent=0
    _
  %s5 = ssub.s32 1, %s3
  %s6 = scalar_select 0, %s5, %s3
  // Predicated region
  $region2: #{tpu_custom_call.1} parent=0 // pred_check
    _
  $region3: #{tpu_custom_call.1} parent=0 // pred_check_branch
    %8 = sbr.rel (0) target = $region5
  $region4: #{tpu_custom_call.1} parent=0 // pred_region
    _
  $region5: #{tpu_custom_call.1} parent=0 // pred_fallthru
    _
  // Predicated region
  $region6: #{tpu_custom_call.1} parent=0 // pred_check
    _
  $region7: #{tpu_custom_call.1} parent=0 // pred_check_branch
    %10 = sbr.rel (0) target = $region9
  $region8: #{tpu_custom_call.1} parent=0 // pred_region
    _
  $region9: #{tpu_custom_call.1} parent=0 // pred_fallthru
    _
  %v11 = vld [vmem:[%s1] sm:$0xff]
  %v12 = vld [vmem:[%s1 + $0x8] sm:$0xff]
  %v13 = vld [vmem:[%s1 + $0x10] sm:$0xff]
  %v14 = vld [vmem:[%s1 + $0x18] sm:$0xff]
  %v15 = vld [vmem:[%s1 + $0x20] sm:$0xff]
  %v16 = vld [vmem:[%s1 + $0x28] sm:$0xff]
  %v17 = vld [vmem:[%s1 + $0x30] sm:$0xff]
  %v18 = vld [vmem:[%s1 + $0x38] sm:$0xf]
  %v19 = vld [vmem:[%s0] sm:$0x1]
  %21 = vset.pattern.permute.xlu0 0
  %22 = vperm.xlu0 %21, %v11
  %v23 = vpop.permute.xlu0 %22
  %26 = vset.pattern.permute.xlu0 0
  %27 = vperm.xlu0 %26, %v12
  %v28 = vpop.permute.xlu0 %27
  %31 = vset.pattern.permute.xlu0 0
  %32 = vperm.xlu0 %31, %v13
  %v33 = vpop.permute.xlu0 %32
  %36 = vset.pattern.permute.xlu0 0
  %37 = vperm.xlu0 %36, %v14
  %v38 = vpop.permute.xlu0 %37
  %41 = vset.pattern.permute.xlu0 0
  %42 = vperm.xlu0 %41, %v15
  %v43 = vpop.permute.xlu0 %42
  %46 = vset.pattern.permute.xlu0 0
  %47 = vperm.xlu0 %46, %v16
  %v48 = vpop.permute.xlu0 %47
  %51 = vset.pattern.permute.xlu0 0
  %52 = vperm.xlu0 %51, %v17
  %v53 = vpop.permute.xlu0 %52
  %56 = vset.pattern.permute.xlu0 0
  %57 = vperm.xlu0 %56, %v18
  %v58 = vpop.permute.xlu0 %57
  %v61 = vlaneseq
  %v62 = vshrl.u32 %v61, 7
  %v63 = vsub.s32 0, %v62
  %v64 = vrot.slane %v19, %v63
  %v66 = vsub.f32 %v23, %v64
  %v67 = vsub.f32 %v28, %v64
  %v68 = vsub.f32 %v33, %v64
  %v69 = vsub.f32 %v38, %v64
  %v70 = vsub.f32 %v43, %v64
  %v71 = vsub.f32 %v48, %v64
  %v72 = vsub.f32 %v53, %v64
  %v73 = vsub.f32 %v58, %v64
  %v74 = vmul.f32 %v66, -48.02
  %v75 = vmul.f32 %v67, -48.02
  %v76 = vmul.f32 %v68, -48.02
  %v77 = vmul.f32 %v69, -48.02
  %v78 = vmul.f32 %v70, -48.02
  %v79 = vmul.f32 %v71, -48.02
  %v80 = vmul.f32 %v72, -48.02
  %v81 = vmul.f32 %v73, -48.02
  %v82 = vmul.f32 %v74, %v66
  %v83 = vmul.f32 %v75, %v67
  %v84 = vmul.f32 %v76, %v68
  %v85 = vmul.f32 %v77, %v69
  %v86 = vmul.f32 %v78, %v70
  %v87 = vmul.f32 %v79, %v71
  %v88 = vmul.f32 %v80, %v72
  %v89 = vmul.f32 %v81, %v73
  %v90 = vmul.f32 %v82, 1.442695
  %v91 = vpow.pop %v90
  %v92 = vmul.f32 %v83, 1.442695
  %v93 = vpow.pop %v92
  %v94 = vmul.f32 %v84, 1.442695
  %v95 = vpow.pop %v94
  %v96 = vmul.f32 %v85, 1.442695
  %v97 = vpow.pop %v96
  %v98 = vmul.f32 %v86, 1.442695
  %v99 = vpow.pop %v98
  %v100 = vmul.f32 %v87, 1.442695
  %v101 = vpow.pop %v100
  %v102 = vmul.f32 %v88, 1.442695
  %v103 = vpow.pop %v102
  %v104 = vmul.f32 %v89, 1.442695
  %v105 = vpow.pop %v104
  %vm106 = vcmask 408576
  %107 = vst.msk [vmem:[%s2] sm:$0xff] %vm106, %v91
  %108 = vst.msk [vmem:[%s2 + $0x8] sm:$0xff] %vm106, %v93
  %109 = vst.msk [vmem:[%s2 + $0x10] sm:$0xff] %vm106, %v95
  %110 = vst.msk [vmem:[%s2 + $0x18] sm:$0xff] %vm106, %v97
  %111 = vst.msk [vmem:[%s2 + $0x20] sm:$0xff] %vm106, %v99
  %112 = vst.msk [vmem:[%s2 + $0x28] sm:$0xff] %vm106, %v101
  %113 = vst.msk [vmem:[%s2 + $0x30] sm:$0xff] %vm106, %v103
  %vm114 = vcmask 404480
  %115 = vst.msk [vmem:[%s2 + $0x38] sm:$0xf] %vm114, %v105
  // Predicated region
  $region10: #{tpu_custom_call.1} parent=0 // pred_check
    _
  $region11: #{tpu_custom_call.1} parent=0 // pred_check_branch
    %117 = sbr.rel (0) target = $region13
  $region12: #{tpu_custom_call.1} parent=0 // pred_region
    _
  $region13: #{tpu_custom_call.1} parent=0 // pred_fallthru
    _
  // Predicated region
  $region14: #{tpu_custom_call.1} parent=0 // pred_check
    _
  $region15: #{tpu_custom_call.1} parent=0 // pred_check_branch
    %119 = sbr.rel (0) target = $region17
  $region16: #{tpu_custom_call.1} parent=0 // pred_region
    _
  $region17: #{tpu_custom_call.1} parent=0 // pred_fallthru
    _

</llo_original>
